<compile_context>
chip_gen: v7x
topology: tpu7x:2x2x1
jax: 0.10.0
libtpu: 0.0.40
codegen_flags: <defaults>
</compile_context>

<pallas_src>
import math

import jax
import jax.numpy as jnp
from jax.experimental import pallas as pl
from jax.experimental.pallas import tpu as pltpu


def _layer_scale_kernel(x_ref, g_ref, o_ref):
    # x_ref: (TM, DL) tile of (folded) tokens in x.dtype; g_ref: (1, DL) fp32
    # gamma row (sublane-broadcast).  fp32 multiply, cast back to output dtype.
    o_ref[...] = (x_ref[...].astype(jnp.float32) * g_ref[...]).astype(o_ref.dtype)


def _round_down(x: int, m: int) -> int:
    return (x // m) * m


def _largest_divisor_leq(n: int, cap: int) -> int:
    """Largest divisor of n that is <= cap (n >= 1, cap >= 1)."""
    best = 1
    d = 1
    while d * d <= n:
        if n % d == 0:
            for c in (d, n // d):
                if c <= cap and c > best:
                    best = c
        d += 1
    return best


def _num_tensorcores() -> int:
    """Best-effort TC-per-chip count (v7x = 2, v5e/v6e = 1). Safe default: 1."""
    try:
        ver = str(getattr(pltpu.get_tpu_info(), "chip_version", ""))
        if "7" in ver:
            return 2
    except Exception:
        pass
    try:
        if "v7" in jax.devices()[0].device_kind.lower():
            return 2
    except Exception:
        pass
    return 1


def _layer_scale_pallas(x2d: jax.Array, g_row: jax.Array, *, donate_x: bool) -> jax.Array:
    """Lane-dense core: x2d is (Mr, Dl) with Dl a multiple of 128, g_row (1, Dl) fp32."""
    Mr, Dl = int(x2d.shape[0]), int(x2d.shape[1])
    itemsize = jnp.dtype(x2d.dtype).itemsize
    # Sublane alignment: 8 rows for 4-byte, 16 for 2-byte, 32 for 1-byte dtypes.
    align = max(8, 32 // itemsize)

    # ---- Bytes-based tile sizing -------------------------------------------
    # ~4 MiB tiles: within the 2-4 MiB (v7x) and 4-8 MiB (v5e/v6e) sweet spots,
    # and 2x(in+out) double-buffered tiles stay ~16 MiB << 64 MiB per-TC VMEM.
    TARGET_TILE_BYTES = 4 << 20

    # Column chunking (only triggers for extremely wide D): chunk must be a
    # multiple-of-128 divisor of Dl so every block stays lane-dense.
    max_cols = TARGET_TILE_BYTES // (align * itemsize)          # >= 128 always
    n_lanes = Dl // 128
    dl_tile = 128 * _largest_divisor_leq(n_lanes, max(1, max_cols // 128))

    rows_budget = max(align, _round_down(TARGET_TILE_BYTES // (dl_tile * itemsize), align))
    tm = Mr if Mr <= rows_budget else rows_budget

    # v7x megacore: keep the row-grid length a multiple of the TC count (or >= 8)
    # so both TensorCores get equal work. On single-TC chips we never force
    # extra grid steps (pure per-step overhead).
    num_tc = _num_tensorcores()
    if num_tc >= 2 and Mr > align:
        for _ in range(4):
            gm = pl.cdiv(Mr, tm)
            if gm % num_tc == 0 or gm >= 8:
                break
            gm2 = ((gm // num_tc) + 1) * num_tc
            tm = max(align, _round_down(pl.cdiv(Mr, gm2), align))

    grid = (pl.cdiv(Mr, tm), Dl // dl_tile)

    # Double-buffered x tile + out tile + tiny fp32 gamma tile, plus headroom.
    # Capped at 48 MiB: always <= 64 MiB physical per-TC VMEM on v7x.
    pipeline_bytes = 2 * 2 * tm * dl_tile * itemsize + 2 * dl_tile * 4
    vmem_limit_bytes = int(min(48 << 20, pipeline_bytes + (8 << 20)))

    cost = pl.CostEstimate(
        flops=int(Mr) * int(Dl),
        transcendentals=0,
        bytes_accessed=int(2 * Mr * Dl * itemsize + Dl * 4),
    )

    extra_kwargs = {}
    if donate_x:
        # NOTE: only pays off if the caller also donates x at the jit boundary
        # (donate_argnums) and the wrapper reshapes stay bitcasts; otherwise XLA
        # inserts a defensive copy.  Aliasing itself is safe: input and output
        # block indices are identical at every grid step.
        extra_kwargs["input_output_aliases"] = {0: 0}

    return pl.pallas_call(
        _layer_scale_kernel,
        out_shape=jax.ShapeDtypeStruct((Mr, Dl), x2d.dtype),
        grid_spec=pltpu.PrefetchScalarGridSpec(
            num_scalar_prefetch=0,
            grid=grid,
            in_specs=[
                pl.BlockSpec((tm, dl_tile), lambda i, j: (i, j)),   # x tile (streamed)
                pl.BlockSpec((1, dl_tile), lambda i, j: (0, j)),    # gamma row (resident)
            ],
            out_specs=pl.BlockSpec((tm, dl_tile), lambda i, j: (i, j)),
        ),
        compiler_params=pltpu.CompilerParams(
            dimension_semantics=("parallel", "parallel"),
            vmem_limit_bytes=vmem_limit_bytes,
        ),
        cost_estimate=cost,
        **extra_kwargs,
    )(x2d, g_row)


def layer_scale(x: jax.Array, gamma: jax.Array, *, donate_x: bool = False) -> jax.Array:
    """Apply LayerScale: y = x * gamma (gamma broadcast over the last dim).

    x: (..., D), gamma: (D,).  Output dtype == x.dtype.
    The multiply runs in fp32 with the fp32 gamma parameter (matching PyTorch's
    parameter-dtype promotion); for bf16/fp8 inputs only the final cast back to
    x.dtype differs from PyTorch's promoted-output dtype.

    donate_x=True aliases x's HBM buffer to the output (pallas
    input_output_aliases); it is only effective when the caller donates x at
    the jit boundary and must only be used when x is dead afterwards.
    """
    orig_shape = x.shape
    D = int(orig_shape[-1])
    assert gamma.shape == (D,), f"gamma must be ({D},), got {gamma.shape}"

    g32 = gamma.astype(jnp.float32)
    x2d = x.reshape(-1, D)
    M = int(x2d.shape[0])
    if M == 0 or D == 0:
        return x

    # Lane-dense folding: k consecutive rows share one 128-multiple lane row.
    k = 128 // math.gcd(D, 128)
    bulk = (M // k) * k

    if bulk == 0:
        # Fewer rows than one fold group: not worth a kernel launch.
        return (x2d.astype(jnp.float32) * g32).astype(x.dtype).reshape(orig_shape)

    Dl = k * D
    g_row = (jnp.tile(g32, k) if k > 1 else g32).reshape(1, Dl)

    x_bulk = x2d[:bulk].reshape(bulk // k, Dl)          # bitcast-reshape (row-major)
    y_bulk = _layer_scale_pallas(x_bulk, g_row, donate_x=donate_x and bulk == M)
    y_bulk = y_bulk.reshape(bulk, D)

    if bulk == M:
        return y_bulk.reshape(orig_shape)

    # Remainder (< k rows) when M % k != 0: plain jnp, then stitch. The concat
    # copy only occurs in this rare misaligned case; the bulk stays lane-dense.
    y_rem = (x2d[bulk:].astype(jnp.float32) * g32).astype(x.dtype)
    return jnp.concatenate([y_bulk, y_rem], axis=0).reshape(orig_shape)


if __name__ == "__main__":
    key = jax.random.PRNGKey(0)

    # Small shapes consistent with a transformer block using LayerScale.
    B, N, D = 2, 8, 32
    init_values = 1e-5

    # Deterministic parameter init, as in the module's __init__:
    # gamma = init_values * ones(dim)
    gamma = init_values * jnp.ones((D,), dtype=jnp.float32)

    x = jax.random.normal(key, (B, N, D), dtype=jnp.float32)
    y = jax.block_until_ready(layer_scale(x, gamma))
    assert y.shape == x.shape and y.dtype == x.dtype
    assert jnp.allclose(y, x * gamma, atol=1e-7, rtol=1e-6)

    # Multi-step grid + lane-dense folding path (folded Mr = 256, Dl = 128).
    x2 = jax.random.normal(jax.random.PRNGKey(1), (8, 128, D), dtype=jnp.float32)
    y2 = jax.block_until_ready(layer_scale(x2, gamma))
    assert jnp.allclose(y2, x2 * gamma, atol=1e-7, rtol=1e-6)

    # Misaligned row count (M % k != 0): bulk via kernel, remainder via jnp.
    x3 = jax.random.normal(jax.random.PRNGKey(2), (3, 7, D), dtype=jnp.float32)
    y3 = jax.block_until_ready(layer_scale(x3, gamma))
    assert jnp.allclose(y3, x3 * gamma, atol=1e-7, rtol=1e-6)

    # D already a multiple of 128 (no folding), bf16 input.
    D4 = 256
    gamma4 = init_values * jnp.ones((D4,), dtype=jnp.float32)
    x4 = jax.random.normal(jax.random.PRNGKey(3), (2, 16, D4), dtype=jnp.bfloat16)
    y4 = jax.block_until_ready(layer_scale(x4, gamma4))
    y4_ref = (x4.astype(jnp.float32) * gamma4).astype(jnp.bfloat16)
    assert y4.dtype == jnp.bfloat16 and jnp.allclose(
        y4.astype(jnp.float32), y4_ref.astype(jnp.float32), atol=1e-6, rtol=1e-3
    )

    print("KERNEL_OK")
</pallas_src>

<mosaic_0001>
module attributes {stable_mosaic.version = 11 : i64} {
  func.func @_layer_scale_kernel(%arg0: i32, %arg1: i32, %arg2: memref<4x128xf32, #tpu.memory_space<vmem>>, %arg3: memref<1x128xf32, #tpu.memory_space<vmem>>, %arg4: memref<4x128xf32, #tpu.memory_space<vmem>>) attributes {dimension_semantics = [#tpu.dimension_semantics<parallel>, #tpu.dimension_semantics<parallel>], iteration_bounds = array<i64: 1, 1>, scalar_prefetch = 0 : i64, scratch_operands = 0 : i64, tpu.core_type = #tpu.core_type<tc>, window_params = [{transform_indices = @transform_0, window_bounds = array<i64: 4, 128>}, {transform_indices = @transform_1, window_bounds = array<i64: 1, 128>}, {transform_indices = @transform_2, window_bounds = array<i64: 4, 128>}]} {
    %c0 = arith.constant 0 : index
    %c0_0 = arith.constant 0 : index
    %0 = vector.load %arg2[%c0, %c0_0] : memref<4x128xf32, #tpu.memory_space<vmem>>, vector<4x128xf32>
    %c0_1 = arith.constant 0 : index
    %c0_2 = arith.constant 0 : index
    %1 = vector.load %arg3[%c0_1, %c0_2] : memref<1x128xf32, #tpu.memory_space<vmem>>, vector<1x128xf32>
    %2 = vector.broadcast %1 : vector<1x128xf32> to vector<4x128xf32>
    %3 = arith.mulf %0, %2 : vector<4x128xf32>
    %c0_3 = arith.constant 0 : index
    %c0_4 = arith.constant 0 : index
    %4 = vector.load %arg4[%c0_3, %c0_4] : memref<4x128xf32, #tpu.memory_space<vmem>>, vector<4x128xf32>
    tpu.vector_store %arg4[%c0_3, %c0_4], %3 {strides = array<i32>} : memref<4x128xf32, #tpu.memory_space<vmem>>, vector<4x128xf32>,
    return
  }
  func.func @transform_0(%arg0: i32, %arg1: i32) -> (i32, i32) {
    %c0_i32 = arith.constant 0 : i32
    return %arg0, %arg1 : i32, i32
  }
  func.func @transform_1(%arg0: i32, %arg1: i32) -> (i32, i32) {
    %c0_i32 = arith.constant 0 : i32
    %c0_i32_0 = arith.constant 0 : i32
    return %c0_i32, %arg1 : i32, i32
  }
  func.func @transform_2(%arg0: i32, %arg1: i32) -> (i32, i32) {
    %c0_i32 = arith.constant 0 : i32
    return %arg0, %arg1 : i32, i32
  }
}

</mosaic_0001>

<llo_original>
// kernel: tpu_custom_call.1
$region0: #{tpu_custom_call.1}
  #allocation0 [shape = 'u32[]', space=smem, size = 0x4, offset = 0x4, fixed_abs, tag = 'smem constant byte address 0x4 - core index']
  #allocation1 [shape = 'u32[144,128]{1,0:T(1,128)}', space=vmem, size = 0x12000, scoped, tag = 'internal scratch']
  %s0 = inlined_call_operand.hbm [shape: f32[4,128], index: 0, kind: input, shape index: {}]
  %s1 = inlined_call_operand.vmem [shape: f32[1,128], index: 1, kind: input, shape index: {}]
  %s2 = inlined_call_operand.hbm [shape: f32[4,128], index: 2, kind: output, shape index: {}]
  %s3 = sld [smem:[#allocation0]]
  $region22: #{tpu_custom_call.1} parent=0
    _
  %s5 = ssub.s32 1, %s3
  %s6 = scalar_select 0, %s5, %s3
  $region1: #{tpu_custom_call.1} parent=0
    #allocation2 [shape = 'u8[2048]{0}', space=vmem, size = 0x800, scoped, tag = 'input window, operand 0, single buffered']
    #allocation3 [shape = 's32[1]{0}', space=sflag, size = 0x4, scoped, tag = 'scoped memory for tpu_custom_call.1']
    #allocation4 [shape = 's32[1]{0}', space=sflag, size = 0x4, scoped, tag = 'scoped memory for tpu_custom_call.1']
    #allocation5 [shape = 'u8[2048]{0}', space=vmem, size = 0x800, scoped, tag = 'output window, operand 0, single buffered']
    %7 = vsyncpa [#allocation3], 0
    %8 = vsyncpa [#allocation4], 0
    // Predicated region
    $region2: #{tpu_custom_call.1} parent=1 // pred_check
      _
    $region3: #{tpu_custom_call.1} parent=1 // pred_check_branch
      %10 = sbr.rel (0) target = $region5
    $region4: #{tpu_custom_call.1} parent=1 // pred_region
      %s12 = ssub.s32 64, 64
      %13 = vsyncadd [#allocation3], %s12
      %s15 = sshll.u32 [#allocation2], 4
      %s16 = int_to_ptr.vmem [resolvable:$true] %s15
      %18 = dma.hbm_to_vmem [thread:$0]  %s0, 64, %s16, [#allocation3]
    $region5: #{tpu_custom_call.1} parent=1 // pred_fallthru
      _
    // Predicated region
    $region6: #{tpu_custom_call.1} parent=1 // pred_check
      _
    $region7: #{tpu_custom_call.1} parent=1 // pred_check_branch
      %20 = sbr.rel (0) target = $region9
    $region8: #{tpu_custom_call.1} parent=1 // pred_region
      _
    $region9: #{tpu_custom_call.1} parent=1 // pred_fallthru
      _
    // Predicated region
    $region10: #{tpu_custom_call.1} parent=1 // pred_check
      _
    $region11: #{tpu_custom_call.1} parent=1 // pred_check_branch
      %22 = sbr.rel (0) target = $region13
    $region12: #{tpu_custom_call.1} parent=1 // pred_region
      %23 = dma.done [#allocation3], 64
    $region13: #{tpu_custom_call.1} parent=1 // pred_fallthru
      _
    %v24 = vld [vmem:[#allocation2] sm:$0xf]
    %v25 = vld [vmem:[%s1] sm:$0x1]
    %v27 = vlaneseq
    %v28 = vshrl.u32 %v27, 7
    %v29 = vsub.s32 0, %v28
    %v30 = vrot.slane %v25, %v29
    %v32 = vmul.f32 %v24, %v30
    %33 = vst [vmem:[#allocation5] sm:$0xf] %v32
    // Predicated region
    $region14: #{tpu_custom_call.1} parent=1 // pred_check
      _
    $region15: #{tpu_custom_call.1} parent=1 // pred_check_branch
      %35 = sbr.rel (0) target = $region17
    $region16: #{tpu_custom_call.1} parent=1 // pred_region
      %s37 = ssub.s32 64, 64
      %38 = vsyncadd [#allocation4], %s37
      %s40 = sshll.u32 [#allocation5], 4
      %s41 = int_to_ptr.vmem [resolvable:$true] %s40
      %43 = dma.vmem_to_hbm [thread:$0]  %s41, 64, %s2, [#allocation4]
    $region17: #{tpu_custom_call.1} parent=1 // pred_fallthru
      _
    // Predicated region
    $region18: #{tpu_custom_call.1} parent=1 // pred_check
      _
    $region19: #{tpu_custom_call.1} parent=1 // pred_check_branch
      %45 = sbr.rel (0) target = $region21
    $region20: #{tpu_custom_call.1} parent=1 // pred_region
      %46 = dma.done [#allocation4], 64
    $region21: #{tpu_custom_call.1} parent=1 // pred_fallthru
      _
    %47 = vsyncpa [#allocation3], 1
    %48 = vsyncpa [#allocation4], 1

</llo_original>
